<compile_context>
chip_gen: v5e
topology: v5e:2x2
jax: 0.10.0
libtpu: 0.0.40
codegen_flags: <defaults>
</compile_context>

<pallas_src>
import math

import jax
import jax.numpy as jnp
from jax.experimental import pallas as pl
from jax.experimental.pallas import tpu as pltpu


# ---------------------------------------------------------------------------
# Kernel: scale one sample's tile by that sample's scalar.
# ---------------------------------------------------------------------------
def drop_path_kernel(x_ref, scale_ref, o_ref):
    # x_ref:     (1, tr, W) tile of one sample's payload (VMEM)
    # scale_ref: (B,) per-sample scale (mask / keep_prob), whole array in SMEM
    # o_ref:     (1, tr, W) output tile
    b = pl.program_id(0)
    s = scale_ref[b].astype(x_ref.dtype)          # keep the multiply in the input dtype
    o_ref[...] = (x_ref[...] * s).astype(o_ref.dtype)


# ---------------------------------------------------------------------------
# Layout / tiling heuristics.
# ---------------------------------------------------------------------------
_LANE = 128
_SUBLANE = 8
# 4 MiB per x tile; with in+out double-buffering ~16 MiB of pipelined VMEM.
_TILE_BUDGET_BYTES = 4 << 20
# Above v5e's 16 MiB default scoped limit, below v7x's 64 MiB physical / TC.
_VMEM_LIMIT_BYTES = 32 << 20


def _lane_dense_width(m, max_width=2048):
    """Largest multiple of 128 (<= max_width) dividing m, or None."""
    if m % _LANE != 0:
        return None
    best = _LANE
    for w in range(_LANE, max_width + 1, _LANE):
        if m % w == 0:
            best = w
    return best


def _pick_row_tile(batch, rows, width, itemsize, budget_bytes):
    """As many rows per block as the VMEM budget allows (whole sample if it fits)."""
    bytes_per_row = max(1, width * itemsize)
    cap = max(1, budget_bytes // bytes_per_row)
    if cap >= rows:
        tr = rows                                 # whole sample in one block (full-dim block is legal)
    else:
        tr = max(_SUBLANE, (cap // _SUBLANE) * _SUBLANE)
        tr = min(tr, rows)
    # v7x megacore guard: keep at least 2 total grid steps so both TCs get work.
    if batch == 1 and tr == rows and rows > _SUBLANE:
        half = -(-rows // 2)
        tr = min(rows, ((half + _SUBLANE - 1) // _SUBLANE) * _SUBLANE)
    return tr


def _scale_rows(x, scale):
    """out[b, ...] = x[b, ...] * scale[b], streamed through a Pallas kernel."""
    orig_shape = x.shape
    B = orig_shape[0]
    M = int(math.prod(orig_shape[1:]))            # per-sample element count
    itemsize = jnp.dtype(x.dtype).itemsize

    # Lane-dense re-blocking: the scale is uniform over a whole sample, so we
    # may re-block the payload freely.  Prefer (B, R, W) with W a multiple of
    # 128 -> unmasked full-width vector stores; otherwise keep the natural
    # (B, N, D) layout (full-D blocks are still legal, just masked for D<128).
    W = _lane_dense_width(M)
    if W is None:
        W = orig_shape[-1] if len(orig_shape) >= 2 else 1
    R = M // W

    x3 = x.reshape(B, R, W)                       # row-major reshape: no data movement
    tr = _pick_row_tile(B, R, W, itemsize, _TILE_BUDGET_BYTES)
    grid = (B, pl.cdiv(R, tr))                    # partial last row-block is masked by Pallas

    scale1d = scale.reshape(B).astype(jnp.float32)   # flat 1-D SMEM table: minimal padding

    out = pl.pallas_call(
        drop_path_kernel,
        out_shape=jax.ShapeDtypeStruct((B, R, W), x.dtype),
        grid=grid,
        in_specs=[
            pl.BlockSpec((1, tr, W), lambda b, j: (b, j, 0)),        # lane-dense payload tile
            pl.BlockSpec(memory_space=pltpu.MemorySpace.SMEM),       # tiny per-sample scale table
        ],
        out_specs=pl.BlockSpec((1, tr, W), lambda b, j: (b, j, 0)),
        compiler_params=pltpu.CompilerParams(
            dimension_semantics=("parallel", "parallel"),            # megacore sharding on v7x
            vmem_limit_bytes=_VMEM_LIMIT_BYTES,
        ),
    )(x3, scale1d)

    return out.reshape(orig_shape)


# ---------------------------------------------------------------------------
# Public API mirroring the PyTorch module.
# ---------------------------------------------------------------------------
def drop_path(x, drop_prob=0.0, training=False, *, key=None):
    """Forward pass of DropPath (stochastic depth)."""
    if drop_prob is None or drop_prob == 0.0 or not training:
        return x                                   # identity path, exactly as in the module
    if not (0.0 < drop_prob < 1.0):
        raise ValueError(f"drop_prob must lie in [0, 1); got {drop_prob}")
    if key is None:
        raise ValueError("drop_path with drop_prob > 0 in training mode needs a PRNG key")
    keep_prob = 1.0 - drop_prob
    B = x.shape[0]
    # One uniform draw per sample; floor(keep_prob + u) binarizes, matching torch's
    # `random_tensor.floor_()`.  Only this tiny (B,) vector uses host-side RNG;
    # all per-element work happens in the Pallas kernel.
    u = jax.random.uniform(key, (B,), dtype=jnp.float32)
    mask = jnp.floor(keep_prob + u)
    scale = mask / keep_prob
    # TODO(synk): for very large drop_prob the HBM read of dropped samples could be
    # skipped via a manual mask-gated DMA (memory_space=pl.ANY); not worth the
    # complexity at typical stochastic-depth rates.
    return _scale_rows(x, scale)


class DropPath:
    """Mirror of the PyTorch nn.Module (functional, stateless)."""

    def __init__(self, drop_prob=None):
        self.drop_prob = drop_prob

    def __call__(self, x, *, training=False, key=None):
        return drop_path(x, self.drop_prob, training, key=key)

    def extra_repr(self):
        return 'p={}'.format(self.drop_prob)


if __name__ == "__main__":
    key = jax.random.PRNGKey(0)
    kx, kmask = jax.random.split(key)

    # Tokens (B, N, C), as in the ViT blocks where DropPath sits.
    B, N, C = 2, 8, 32
    x = jax.random.normal(kx, (B, N, C), dtype=jnp.float32)

    drop_prob = 0.25
    keep_prob = 1.0 - drop_prob
    module = DropPath(drop_prob)

    # --- training path: stochastic depth active, kernel does the per-sample scaling ---
    out = jax.block_until_ready(module(x, training=True, key=kmask))

    u = jax.random.uniform(kmask, (B,), dtype=jnp.float32)
    random_tensor = jnp.floor(keep_prob + u)
    ref = x / keep_prob * random_tensor[:, None, None]

    assert out.shape == x.shape
    assert jnp.allclose(out, ref, atol=1e-5, rtol=1e-5), "mismatch vs reference (training path)"
    for b in range(B):
        if float(random_tensor[b]) == 0.0:
            assert jnp.all(out[b] == 0.0)

    # --- eval mode and drop_prob=0 are the identity ---
    assert jnp.allclose(module(x, training=False, key=kmask), x)
    assert jnp.allclose(drop_path(x, 0.0, training=True, key=kmask), x)

    # --- lane-dense re-blocked path (M % 128 == 0) with larger tiles ---
    B2, N2, C2 = 2, 300, 128
    x2 = jax.random.normal(jax.random.PRNGKey(1), (B2, N2, C2), dtype=jnp.float32)
    k2 = jax.random.PRNGKey(2)
    out2 = jax.block_until_ready(drop_path(x2, drop_prob, training=True, key=k2))
    u2 = jax.random.uniform(k2, (B2,), dtype=jnp.float32)
    m2 = jnp.floor(keep_prob + u2)
    ref2 = x2 / keep_prob * m2[:, None, None]
    assert jnp.allclose(out2, ref2, atol=1e-5, rtol=1e-5), "mismatch vs reference (lane-dense path)"

    # --- fallback layout (per-sample size not a multiple of 128) + bf16 dtype ---
    B3, N3, C3 = 2, 7, 48
    x3 = jax.random.normal(jax.random.PRNGKey(3), (B3, N3, C3),
                           dtype=jnp.float32).astype(jnp.bfloat16)
    k3 = jax.random.PRNGKey(4)
    out3 = jax.block_until_ready(drop_path(x3, drop_prob, training=True, key=k3))
    u3 = jax.random.uniform(k3, (B3,), dtype=jnp.float32)
    m3 = jnp.floor(keep_prob + u3)
    scale3 = (m3 / keep_prob).astype(jnp.bfloat16)
    ref3 = x3 * scale3[:, None, None]
    assert out3.dtype == jnp.bfloat16
    assert jnp.allclose(out3.astype(jnp.float32), ref3.astype(jnp.float32),
                        atol=2e-2, rtol=2e-2), "mismatch vs reference (bf16 fallback path)"

    # --- B == 1 path: megacore guard keeps >= 2 grid steps ---
    x4 = jax.random.normal(jax.random.PRNGKey(5), (1, 256, 256), dtype=jnp.float32)
    k4 = jax.random.PRNGKey(6)
    out4 = jax.block_until_ready(drop_path(x4, drop_prob, training=True, key=k4))
    u4 = jax.random.uniform(k4, (1,), dtype=jnp.float32)
    m4 = jnp.floor(keep_prob + u4)
    ref4 = x4 / keep_prob * m4[:, None, None]
    assert jnp.allclose(out4, ref4, atol=1e-5, rtol=1e-5), "mismatch vs reference (B=1 path)"

    print("KERNEL_OK")
</pallas_src>

<mosaic_0001>
module attributes {stable_mosaic.version = 11 : i64} {
  func.func @drop_path_kernel(%arg0: i32, %arg1: i32, %arg2: memref<1x1x256xf32, #tpu.memory_space<vmem>>, %arg3: memref<2xf32, #tpu.memory_space<smem>>, %arg4: memref<1x1x256xf32, #tpu.memory_space<vmem>>) attributes {dimension_semantics = [#tpu.dimension_semantics<parallel>, #tpu.dimension_semantics<parallel>], iteration_bounds = array<i64: 2, 1>, scalar_prefetch = 0 : i64, scratch_operands = 0 : i64, tpu.core_type = #tpu.core_type<tc>, window_params = [{transform_indices = @transform_0, window_bounds = array<i64: 1, 1, 256>}, {transform_indices = @transform_1, window_bounds = array<i64: 2>}, {transform_indices = @transform_2, window_bounds = array<i64: 1, 1, 256>}]} {
    %0 = arith.index_cast %arg0 : i32 to index
    %1 = memref.load %arg3[%0] : memref<2xf32, #tpu.memory_space<smem>>
    %c0 = arith.constant 0 : index
    %c0_0 = arith.constant 0 : index
    %c0_1 = arith.constant 0 : index
    %2 = vector.load %arg2[%c0, %c0_0, %c0_1] : memref<1x1x256xf32, #tpu.memory_space<vmem>>, vector<1x1x256xf32>
    %3 = vector.broadcast %1 : f32 to vector<1x1x256xf32>
    %4 = arith.mulf %2, %3 : vector<1x1x256xf32>
    %c0_2 = arith.constant 0 : index
    %c0_3 = arith.constant 0 : index
    %c0_4 = arith.constant 0 : index
    %5 = vector.load %arg4[%c0_2, %c0_3, %c0_4] : memref<1x1x256xf32, #tpu.memory_space<vmem>>, vector<1x1x256xf32>
    tpu.vector_store %arg4[%c0_2, %c0_3, %c0_4], %4 {strides = array<i32>} : memref<1x1x256xf32, #tpu.memory_space<vmem>>, vector<1x1x256xf32>,
    return
  }
  func.func @transform_0(%arg0: i32, %arg1: i32) -> (i32, i32, i32) {
    %c0_i32 = arith.constant 0 : i32
    %c0_i32_0 = arith.constant 0 : i32
    return %arg0, %arg1, %c0_i32 : i32, i32, i32
  }
  func.func @transform_1(%arg0: i32, %arg1: i32) -> i32 {
    %c0_i32 = arith.constant 0 : i32
    %c0_i32_0 = arith.constant 0 : i32
    return %c0_i32 : i32
  }
  func.func @transform_2(%arg0: i32, %arg1: i32) -> (i32, i32, i32) {
    %c0_i32 = arith.constant 0 : i32
    %c0_i32_0 = arith.constant 0 : i32
    return %arg0, %arg1, %c0_i32 : i32, i32, i32
  }
}

</mosaic_0001>

<llo_original>
// kernel: tpu_custom_call.1
$region0: #{tpu_custom_call.1}
  #allocation0 [shape = 'u32[]', space=smem, size = 0x4, offset = 0x4, fixed_abs, tag = 'smem constant byte address 0x4 - core index']
  #allocation1 [shape = 'u32[72,128]{1,0:T(1,128)}', space=vmem, size = 0x9000, scoped, tag = 'internal scratch']
  %s0 = inlined_call_operand.hbm [shape: f32[2,1,256], index: 0, kind: input, shape index: {}]
  %s1 = inlined_call_operand.hbm [shape: f32[2], index: 1, kind: input, shape index: {}]
  %s2 = inlined_call_operand.hbm [shape: f32[2,1,256], index: 2, kind: output, shape index: {}]
  %s3 = sld [smem:[#allocation0]]
  $region49: #{tpu_custom_call.1} parent=0
    _
  %s5 = ssub.s32 1, %s3
  %s6 = scalar_select 0, %s5, %s3
  $region1: #{tpu_custom_call.1} parent=0
    #allocation2 [shape = 'u8[2048]{0}', space=vmem, size = 0x800, scoped, tag = 'input window, operand 0']
    #allocation3 [shape = 's32[2]{0}', space=sflag, size = 0x8, scoped, tag = 'scoped memory for tpu_custom_call.1']
    #allocation4 [shape = 's32[2]{0}', space=sflag, size = 0x8, scoped, tag = 'scoped memory for tpu_custom_call.1']
    #allocation5 [shape = 's32[2]{0}', space=sflag, size = 0x8, scoped, tag = 'scoped memory for tpu_custom_call.1']
    #allocation6 [shape = 'u8[512]{0}', space=smem, size = 0x200, scoped, tag = 'input window, operand 1, single buffered']
    #allocation7 [shape = 'u8[2048]{0}', space=vmem, size = 0x800, scoped, tag = 'output window, operand 0']
    %7 = vsyncpa [#allocation3], 0
    %s8 = scalar_lea.sflag [#allocation3], 1
    %9 = vsyncpa %s8, 0
    %10 = vsyncpa [#allocation5], 0
    %11 = vsyncpa [#allocation4], 0
    %s12 = scalar_lea.sflag [#allocation4], 1
    %13 = vsyncpa %s12, 0
    loop: start=0, step=1, limit=4
    $region2: #{tpu_custom_call.1} parent=1 // loop_pre_header
      _
    $region3: #{tpu_custom_call.1} parent=1 // loop_header
      %s15 = sphi 0, %s19
      %p16 = scmp.ge.s32.totalorder %s15, 4
      %s22 = sphi 0, %s34
      %s23 = sphi 0, %s30
      %s24 = sphi 0, %s22
      %s25 = sphi 0, %s23
      %s26 = sphi 0, %s24
      %s27 = sphi 0, %s25
      %s39 = sphi 0, %s41
      %s42 = sphi 0, %s39
      %s43 = sphi 0, %s42
      %s59 = sphi 0, %s43
      %s63 = sphi 0, %s63
      %s65 = sphi 0, %s63
      %s66 = sphi 0, %s65
      %s80 = sphi 0, %s66
      %s88 = sphi 0, %s90
      %s91 = sphi 0, %s88
      %s92 = sphi 0, %s91
      %s108 = sphi 0, %s92
    $region4: #{tpu_custom_call.1} parent=1 // loop_header_branch
      %18 = sbr.rel (%p16) target = $region8
    $region5: #{tpu_custom_call.1} parent=1 // loop_body
      %s20 = ssub.s32 %s15, 1
      %s21 = ssub.s32 %s15, 2
      %s28 = sadd.s32 1, %s23
      %p29 = scmp.ge.s32.totalorder %s28, 1
      %s30 = scalar_select %p29, 0, %s28
      %s31 = sadd.s32 1, %s22
      %s32 = scalar_select %p29, %s31, %s22
      %p33 = scmp.ge.s32.totalorder %s32, 2
      %s34 = scalar_select %p33, 0, %s32
      %s35 = ssub.s32 %s22, %s34
      %s36 = ssub.s32 %s23, %s30
      %s37 = sor.u32 %s35, %s36
      %p38 = scmp.eq.s32.totalorder %s37, 0
      %s40 = sadd.s32 %s39, 1
      %s41 = scalar_select %p38, %s39, %s40
      %p44 = pneg %p38
      %p45 = scmp.eq.s32.totalorder %s15, 1
      %p46 = por %p44, %p45
      %p47 = scmp.ne.s32.totalorder %s39, %s42
      %p48 = scmp.eq.s32.totalorder %s15, 0
      %p49 = por %p47, %p48
      %p50 = scmp.ne.s32.totalorder %s39, %s42
      %p51 = scmp.eq.s32.totalorder %s20, 1
      %p52 = por %p50, %p51
      %p53 = scmp.ne.s32.totalorder %s42, %s43
      %p54 = scmp.eq.s32.totalorder %s20, 0
      %p55 = por %p53, %p54
      %p56 = scmp.ne.s32.totalorder %s42, %s43
      %p57 = scmp.eq.s32.totalorder %s21, 1
      %p58 = por %p56, %p57
      %p60 = scmp.ne.s32.totalorder %s43, %s59
      %p61 = scmp.eq.s32.totalorder %s21, 0
      %p62 = por %p60, %p61
      %s64 = sadd.s32 %s63, 1
      %p67 = scmp.eq.s32.totalorder %s15, 1
      %p68 = scmp.ne.s32.totalorder %s63, %s65
      %p69 = scmp.eq.s32.totalorder %s15, 0
      %p70 = por %p68, %p69
      %p71 = scmp.ne.s32.totalorder %s63, %s65
      %p72 = scmp.eq.s32.totalorder %s20, 1
      %p73 = por %p71, %p72
      %p74 = scmp.ne.s32.totalorder %s65, %s66
      %p75 = scmp.eq.s32.totalorder %s20, 0
      %p76 = por %p74, %p75
      %p77 = scmp.ne.s32.totalorder %s65, %s66
      %p78 = scmp.eq.s32.totalorder %s21, 1
      %p79 = por %p77, %p78
      %p81 = scmp.ne.s32.totalorder %s66, %s80
      %p82 = scmp.eq.s32.totalorder %s21, 0
      %p83 = por %p81, %p82
      %s84 = ssub.s32 %s22, %s34
      %s85 = ssub.s32 %s23, %s30
      %s86 = sor.u32 %s84, %s85
      %p87 = scmp.eq.s32.totalorder %s86, 0
      %s89 = sadd.s32 %s88, 1
      %s90 = scalar_select %p87, %s88, %s89
      %p93 = pneg %p87
      %p94 = scmp.eq.s32.totalorder %s15, 1
      %p95 = por %p93, %p94
      %p96 = scmp.ne.s32.totalorder %s88, %s91
      %p97 = scmp.eq.s32.totalorder %s15, 0
      %p98 = por %p96, %p97
      %p99 = scmp.ne.s32.totalorder %s88, %s91
      %p100 = scmp.eq.s32.totalorder %s20, 1
      %p101 = por %p99, %p100
      %p102 = scmp.ne.s32.totalorder %s91, %s92
      %p103 = scmp.eq.s32.totalorder %s20, 0
      %p104 = por %p102, %p103
      %p105 = scmp.ne.s32.totalorder %s91, %s92
      %p106 = scmp.eq.s32.totalorder %s21, 1
      %p107 = por %p105, %p106
      %p109 = scmp.ne.s32.totalorder %s92, %s108
      %p110 = scmp.eq.s32.totalorder %s21, 0
      %p111 = por %p109, %p110
      %p112 = scmp.le.s32.totalorder 1, %s15
      %p113 = scmp.lt.s32.totalorder %s15, 3
      %p114 = pnand %p112, %p113
      %p115 = pneg %p114
      // Predicated region
      $region9: #{tpu_custom_call.1} parent=5 // pred_check
        _
      $region10: #{tpu_custom_call.1} parent=5 // pred_check_branch
        %117 = sbr.rel (%p114) target = $region12
      $region11: #{tpu_custom_call.1} parent=5 // pred_region
        %s118 = ssub.s32 %s15, 1
        // Predicated region
        $region13: #{tpu_custom_call.1} parent=11 // pred_check
          %p119 = pneg %p76
        $region14: #{tpu_custom_call.1} parent=11 // pred_check_branch
          %121 = sbr.rel (%p119) target = $region16
        $region15: #{tpu_custom_call.1} parent=11 // pred_region
          %123 = vsyncadd [#allocation5], 0
          %s125 = sshll.u32 %s1, 4
          %s126 = int_to_ptr.hbm [resolvable:$true] %s125
          %128 = dma.hbm_to_smem %s126, 16, [#allocation6], [#allocation5]
        $region16: #{tpu_custom_call.1} parent=11 // pred_fallthru
          _
      $region12: #{tpu_custom_call.1} parent=5 // pred_fallthru
        _
      %p129 = scmp.lt.s32.totalorder %s15, 2
      // Predicated region
      $region17: #{tpu_custom_call.1} parent=5 // pred_check
        %p130 = pneg %p129
      $region18: #{tpu_custom_call.1} parent=5 // pred_check_branch
        %132 = sbr.rel (%p130) target = $region20
      $region19: #{tpu_custom_call.1} parent=5 // pred_region
        // Predicated region
        $region21: #{tpu_custom_call.1} parent=19 // pred_check
          %p133 = pneg %p49
        $region22: #{tpu_custom_call.1} parent=19 // pred_check_branch
          %135 = sbr.rel (%p133) target = $region24
        $region23: #{tpu_custom_call.1} parent=19 // pred_region
          %s136 = sand.u32 %s39, 1
          %s137 = scalar_lea.sflag [#allocation3], %s136
          %s138 = sand.u32 %s39, 1
          %s139 = smul.addr %s138, 2
          %s140 = scalar_lea.vmem [#allocation2], %s139
          %142 = vsyncadd %s137, 0
          %s143 = smul.addr %s23, 2
          %s144 = smul.addr %s22, 2
          %s145 = sadd.s32 %s143, %s144
          %s146 = scalar_lea.hbm %s0, %s145
          %s148 = sshll.u32 %s146, 4
          %s149 = int_to_ptr.hbm [resolvable:$true] %s148
          %s150 = sshll.u32 %s140, 4
          %s151 = int_to_ptr.vmem [resolvable:$true] %s150
          %153 = dma.hbm_to_vmem [thread:$0]  %s149, 32, %s151, %s137
        $region24: #{tpu_custom_call.1} parent=19 // pred_fallthru
          _
      $region20: #{tpu_custom_call.1} parent=5 // pred_fallthru
        _
      %p154 = scmp.le.s32.totalorder 1, %s15
      %p155 = scmp.lt.s32.totalorder %s15, 3
      %p156 = pnand %p154, %p155
      %p157 = pneg %p156
      // Predicated region
      $region25: #{tpu_custom_call.1} parent=5 // pred_check
        _
      $region26: #{tpu_custom_call.1} parent=5 // pred_check_branch
        %159 = sbr.rel (%p156) target = $region28
      $region27: #{tpu_custom_call.1} parent=5 // pred_region
        %s160 = ssub.s32 %s15, 1
        %s161 = sand.u32 %s42, 1
        %s162 = scalar_lea.sflag [#allocation3], %s161
        %s163 = sand.u32 %s42, 1
        %s164 = smul.addr %s163, 2
        %s165 = scalar_lea.vmem [#allocation2], %s164
        // Predicated region
        $region29: #{tpu_custom_call.1} parent=27 // pred_check
          %p166 = pneg %p55
        $region30: #{tpu_custom_call.1} parent=27 // pred_check_branch
          %168 = sbr.rel (%p166) target = $region32
        $region31: #{tpu_custom_call.1} parent=27 // pred_region
          %170 = dma.done %s162, 32
        $region32: #{tpu_custom_call.1} parent=27 // pred_fallthru
          _
        // Predicated region
        $region33: #{tpu_custom_call.1} parent=27 // pred_check
          %p171 = pneg %p76
        $region34: #{tpu_custom_call.1} parent=27 // pred_check_branch
          %173 = sbr.rel (%p171) target = $region36
        $region35: #{tpu_custom_call.1} parent=27 // pred_region
          %175 = dma.done [#allocation5], 16
        $region36: #{tpu_custom_call.1} parent=27 // pred_fallthru
          _
        %176 = sfence
        %s177 = sand.u32 %s42, 1
        %s178 = scalar_lea.sflag [#allocation3], %s177
        %s179 = sand.u32 %s42, 1
        %s180 = smul.addr %s179, 2
        %s181 = scalar_lea.vmem [#allocation2], %s180
        %p182 = pneg %p55
        %p183 = pneg %p52
        %p184 = pneg %p76
        %p185 = pneg %p73
        %p186 = pneg %p104
        %p187 = pneg %p101
        %s188 = sand.u32 %s91, 1
        %s189 = scalar_lea.sflag [#allocation4], %s188
        %s190 = sand.u32 %s91, 1
        %s191 = smul.addr %s190, 2
        %s192 = scalar_lea.vmem [#allocation7], %s191
        %s193 = sld [smem:[#allocation6 + %s24]]
        %v194 = vld [vmem:[%s165] sm:$0x3]
        %v195 = vstv %s193
        %v196 = vmul.f32 %v194, %v195
        %v197 = vlaneseq
        %vm198 = vcmp.ge.s32.totalorder %v197, 0
        %vm199 = vcmp.lt.s32.totalorder %v197, 256
        %vm200 = vmand %vm198, %vm199
        %201 = vst.msk [vmem:[%s192] sm:$0x3] %vm200, %v196
        %s202 = sand.u32 %s91, 1
        %s203 = scalar_lea.sflag [#allocation4], %s202
        %s204 = sand.u32 %s91, 1
        %s205 = smul.addr %s204, 2
        %s206 = scalar_lea.vmem [#allocation7], %s205
        // Predicated region
        $region37: #{tpu_custom_call.1} parent=27 // pred_check
          %p207 = pneg %p101
        $region38: #{tpu_custom_call.1} parent=27 // pred_check_branch
          %209 = sbr.rel (%p207) target = $region40
        $region39: #{tpu_custom_call.1} parent=27 // pred_region
          %211 = vsyncadd %s203, 0
          %s212 = smul.addr %s25, 2
          %s213 = smul.addr %s24, 2
          %s214 = sadd.s32 %s212, %s213
          %s215 = scalar_lea.hbm %s2, %s214
          %s217 = sshll.u32 %s206, 4
          %s218 = int_to_ptr.vmem [resolvable:$true] %s217
          %s219 = sshll.u32 %s215, 4
          %s220 = int_to_ptr.hbm [resolvable:$true] %s219
          %222 = dma.vmem_to_hbm [thread:$0]  %s218, 32, %s220, %s203
        $region40: #{tpu_custom_call.1} parent=27 // pred_fallthru
          _
      $region28: #{tpu_custom_call.1} parent=5 // pred_fallthru
        _
      %p223 = scmp.le.s32.totalorder 2, %s15
      // Predicated region
      $region41: #{tpu_custom_call.1} parent=5 // pred_check
        %p224 = pneg %p223
      $region42: #{tpu_custom_call.1} parent=5 // pred_check_branch
        %226 = sbr.rel (%p224) target = $region44
      $region43: #{tpu_custom_call.1} parent=5 // pred_region
        %s227 = ssub.s32 %s15, 2
        // Predicated region
        $region45: #{tpu_custom_call.1} parent=43 // pred_check
          %p228 = pneg %p107
        $region46: #{tpu_custom_call.1} parent=43 // pred_check_branch
          %230 = sbr.rel (%p228) target = $region48
        $region47: #{tpu_custom_call.1} parent=43 // pred_region
          %s231 = sand.u32 %s92, 1
          %s232 = scalar_lea.sflag [#allocation4], %s231
          %s233 = sand.u32 %s92, 1
          %s234 = smul.addr %s233, 2
          %s235 = scalar_lea.vmem [#allocation7], %s234
          %237 = dma.done %s232, 32
        $region48: #{tpu_custom_call.1} parent=43 // pred_fallthru
          _
      $region44: #{tpu_custom_call.1} parent=5 // pred_fallthru
        _
    $region6: #{tpu_custom_call.1} parent=1 // loop_footer
      %s19 = sadd.s32 1, %s15
    $region7: #{tpu_custom_call.1} parent=1 // loop_footer_branch
      %14 = sbr.rel target = $region3
    $region8: #{tpu_custom_call.1} parent=1 // loop_exit
      _
    %238 = vsyncpa [#allocation3], 1
    %s239 = scalar_lea.sflag [#allocation3], 1
    %240 = vsyncpa %s239, 1
    %241 = vsyncpa [#allocation4], 1
    %s242 = scalar_lea.sflag [#allocation4], 1
    %243 = vsyncpa %s242, 1
    %244 = vsyncpa [#allocation5], 1
    %s245 = scalar_lea.sflag [#allocation5], 1
    %246 = vsyncpa %s245, 1

</llo_original>
